<compile_context>
chip_gen: v7x
topology: tpu7x:2x2x1
jax: 0.10.0
libtpu: 0.0.40
codegen_flags: <defaults>
</compile_context>

<pallas_src>
import functools

import jax
import jax.numpy as jnp
from jax.experimental import pallas as pl
from jax.experimental.pallas import tpu as pltpu

LANES = 128
MAX_TILE_ROWS_REDUCE = 8192   # 8192 x 128 x 4B = 4 MiB per f32 input block
MAX_TILE_ROWS_ELEM = 4096     # elementwise path also streams an output block
TARGET_MIN_BLOCKS = 4         # keep both v7x TensorCores busy + pipeline overlap
VMEM_LIMIT_BYTES = 32 * 1024 * 1024


def _round_up(v, m):
    return (v + m - 1) // m * m


def _pow_static(m, gamma):
    """(1 - p_t) ** gamma with small integer gammas unrolled onto the VALU."""
    g = float(gamma)
    if g == int(g) and 0 <= int(g) <= 8:
        gi = int(g)
        if gi == 0:
            return jnp.ones_like(m)
        out = m
        for _ in range(gi - 1):
            out = out * m
        return out
    return m ** g


def _focal_inner(x, t, gamma):
    """(1 - p_t)**gamma * log(p_t + 1e-8); the -alpha factor is applied by the caller.

    sigmoid via tanh = 1 EUP push (instead of exp + reciprocal), and
    m = 1 - p_t = p + t - 2*p*t saves VALU ops vs the expanded p_t form.
    """
    p = 0.5 * jnp.tanh(0.5 * x) + 0.5
    pt2 = p * t
    pt2 = pt2 + pt2
    m = (p + t) - pt2          # == 1 - p_t
    p_t = 1.0 - m
    return _pow_static(m, gamma) * jnp.log(p_t + 1e-08)


def _focal_dense(x, t, alpha, gamma):
    """Plain-jnp focal loss for tiny tails / fallback (matches the torch formula)."""
    x = x.astype(jnp.float32)
    t = t.astype(jnp.float32)
    p = jax.nn.sigmoid(x)
    p_t = p * t + (1.0 - p) * (1.0 - t)
    return (-alpha) * (1.0 - p_t) ** gamma * jnp.log(p_t + 1e-08)


def _focal_sum_kernel(x_ref, t_ref, psum_ref, *, gamma, last_valid_rows, tile_rows):
    """Per-block partial sums of the (un-alpha-scaled) loss; no elementwise writeback."""
    x = x_ref[...].astype(jnp.float32)
    t = t_ref[...].astype(jnp.float32)
    inner = _focal_inner(x, t, gamma)

    if last_valid_rows == tile_rows:
        # All blocks are full: no masking anywhere.
        psum_ref[...] = jnp.sum(inner, axis=0, keepdims=True).reshape(1, 1, LANES)
    else:
        i = pl.program_id(0)
        last = pl.num_programs(0) - 1

        # Only the final (Pallas-clipped) block can contain garbage rows, so the
        # masking work is gated there; every other block takes the cheap path.
        @pl.when(i == last)
        def _():
            rows = jax.lax.broadcasted_iota(jnp.int32, inner.shape, 0)
            masked = jnp.where(rows < last_valid_rows, inner, 0.0)
            psum_ref[...] = jnp.sum(masked, axis=0, keepdims=True).reshape(1, 1, LANES)

        @pl.when(i != last)
        def _():
            psum_ref[...] = jnp.sum(inner, axis=0, keepdims=True).reshape(1, 1, LANES)


def _focal_elem_kernel(x_ref, t_ref, loss_ref, *, alpha, gamma):
    x = x_ref[...].astype(jnp.float32)
    t = t_ref[...].astype(jnp.float32)
    loss = (-alpha) * _focal_inner(x, t, gamma)
    loss_ref[...] = loss.astype(loss_ref.dtype)


def _pick_tile_rows(r, max_rows):
    """Largest tile that fits the budget, while giving >= TARGET_MIN_BLOCKS blocks
    (8-row aligned) so the parallel grid axis shards across both v7x cores."""
    if r <= 8:
        return max(r, 1)            # equal to the full dim -> always legal
    split = _round_up(pl.cdiv(r, TARGET_MIN_BLOCKS), 8)
    return min(max_rows, split)     # multiple of 8, <= r


def focal_loss(inputs, targets, alpha=0.25, gamma=2, reduce=True):
    """Pallas equivalent of FocalLoss.forward (mean-reduced or elementwise)."""
    assert inputs.shape == targets.shape
    orig_shape = inputs.shape
    n = int(inputs.size)
    alpha = float(alpha)

    out_dtype = (inputs.dtype if jnp.issubdtype(inputs.dtype, jnp.floating)
                 else jnp.float32)

    flat_x = inputs.reshape(-1)
    flat_t = targets.reshape(-1)

    r = n // LANES
    rem = n - r * LANES

    if r == 0:
        # Fewer than 128 elements: a kernel launch is pure overhead.
        loss = _focal_dense(flat_x, flat_t, alpha, gamma)
        if reduce:
            return jnp.mean(loss)
        return loss.astype(out_dtype).reshape(orig_shape)

    if rem == 0:
        # Copy-free reshape into a lane-dense (r, 128) slab.
        x2d = flat_x.reshape(r, LANES)
        t2d = flat_t.reshape(r, LANES)
    else:
        # Only for non-multiple-of-128 sizes: kernel handles the 128-aligned
        # prefix, the <128-element tail is handled with plain jnp (no full-array
        # pad, no output [:n] slice).
        x2d = jax.lax.slice(flat_x, (0,), (r * LANES,)).reshape(r, LANES)
        t2d = jax.lax.slice(flat_t, (0,), (r * LANES,)).reshape(r, LANES)
        tail_x = jax.lax.slice(flat_x, (r * LANES,), (n,))
        tail_t = jax.lax.slice(flat_t, (r * LANES,), (n,))

    cparams = pltpu.CompilerParams(
        dimension_semantics=("parallel",),
        vmem_limit_bytes=VMEM_LIMIT_BYTES)

    if reduce:
        tile_rows = _pick_tile_rows(r, MAX_TILE_ROWS_REDUCE)
        num_blocks = pl.cdiv(r, tile_rows)
        last_valid_rows = r - (num_blocks - 1) * tile_rows
        kernel = functools.partial(
            _focal_sum_kernel, gamma=gamma,
            last_valid_rows=last_valid_rows, tile_rows=tile_rows)
        psums = pl.pallas_call(
            kernel,
            out_shape=jax.ShapeDtypeStruct((num_blocks, 1, LANES), jnp.float32),
            grid_spec=pltpu.PrefetchScalarGridSpec(
                num_scalar_prefetch=0,
                grid=(num_blocks,),
                in_specs=[pl.BlockSpec((tile_rows, LANES), lambda i: (i, 0)),
                          pl.BlockSpec((tile_rows, LANES), lambda i: (i, 0))],
                out_specs=pl.BlockSpec((1, 1, LANES), lambda i: (i, 0, 0))),
            compiler_params=cparams,
        )(x2d, t2d)
        total = (-alpha) * jnp.sum(psums)          # alpha hoisted out of the kernel
        if rem:
            total = total + jnp.sum(_focal_dense(tail_x, tail_t, alpha, gamma))
        return total / n

    tile_rows = _pick_tile_rows(r, MAX_TILE_ROWS_ELEM)
    num_blocks = pl.cdiv(r, tile_rows)
    kernel = functools.partial(_focal_elem_kernel, alpha=alpha, gamma=gamma)
    loss2d = pl.pallas_call(
        kernel,
        out_shape=jax.ShapeDtypeStruct((r, LANES), out_dtype),
        grid_spec=pltpu.PrefetchScalarGridSpec(
            num_scalar_prefetch=0,
            grid=(num_blocks,),
            in_specs=[pl.BlockSpec((tile_rows, LANES), lambda i: (i, 0)),
                      pl.BlockSpec((tile_rows, LANES), lambda i: (i, 0))],
            out_specs=pl.BlockSpec((tile_rows, LANES), lambda i: (i, 0))),
        compiler_params=cparams,
    )(x2d, t2d)

    if rem:
        tail = _focal_dense(tail_x, tail_t, alpha, gamma).astype(out_dtype)
        return jnp.concatenate([loss2d.reshape(-1), tail]).reshape(orig_shape)
    return loss2d.reshape(orig_shape)


def _focal_loss_ref(inputs, targets, alpha=0.25, gamma=2, reduce=True):
    p = jax.nn.sigmoid(inputs.astype(jnp.float32))
    t = targets.astype(jnp.float32)
    p_t = p * t + (1.0 - p) * (1.0 - t)
    loss = -alpha * (1.0 - p_t) ** gamma * jnp.log(p_t + 1e-08)
    return loss.mean() if reduce else loss


if __name__ == "__main__":
    key = jax.random.PRNGKey(0)
    k1, k2 = jax.random.split(key)
    shape = (2, 4, 16, 16)                       # NCHW logits / targets
    inputs = jax.random.normal(k1, shape, dtype=jnp.float32)
    targets = (jax.random.uniform(k2, shape) > 0.5).astype(jnp.float32)

    # reduce=True (mean)
    out = focal_loss(inputs, targets, alpha=0.25, gamma=2, reduce=True)
    out = jax.block_until_ready(out)
    ref = _focal_loss_ref(inputs, targets)
    assert jnp.allclose(out, ref, rtol=1e-5, atol=1e-6), (out, ref)

    # reduce=False (elementwise)
    out_elem = jax.block_until_ready(focal_loss(inputs, targets, reduce=False))
    ref_elem = _focal_loss_ref(inputs, targets, reduce=False)
    assert jnp.allclose(out_elem, ref_elem, rtol=1e-5, atol=2e-6)

    # non-multiple-of-128 size exercises the tail path (no pad / no output slice)
    odd = (3, 5, 7)
    xo = jax.random.normal(k1, odd, dtype=jnp.float32)
    to = (jax.random.uniform(k2, odd) > 0.5).astype(jnp.float32)
    out_odd = jax.block_until_ready(focal_loss(xo, to, reduce=True))
    assert jnp.allclose(out_odd, _focal_loss_ref(xo, to), rtol=1e-5, atol=1e-6)
    out_odd_e = jax.block_until_ready(focal_loss(xo, to, reduce=False))
    assert jnp.allclose(out_odd_e, _focal_loss_ref(xo, to, reduce=False),
                        rtol=1e-5, atol=2e-6)

    print("KERNEL_OK")
</pallas_src>

<mosaic_0001>
module attributes {stable_mosaic.version = 11 : i64} {
  func.func @_focal_sum_kernel(%arg0: i32, %arg1: memref<8x128xf32, #tpu.memory_space<vmem>>, %arg2: memref<8x128xf32, #tpu.memory_space<vmem>>, %arg3: memref<1x1x128xf32, #tpu.memory_space<vmem>>) attributes {dimension_semantics = [#tpu.dimension_semantics<parallel>], iteration_bounds = array<i64: 2>, scalar_prefetch = 0 : i64, scratch_operands = 0 : i64, tpu.core_type = #tpu.core_type<tc>, window_params = [{transform_indices = @transform_0, window_bounds = array<i64: 8, 128>}, {transform_indices = @transform_1, window_bounds = array<i64: 8, 128>}, {transform_indices = @transform_2, window_bounds = array<i64: 1, 1, 128>}]} {
    %c0 = arith.constant 0 : index
    %c0_0 = arith.constant 0 : index
    %0 = vector.load %arg1[%c0, %c0_0] : memref<8x128xf32, #tpu.memory_space<vmem>>, vector<8x128xf32>
    %c0_1 = arith.constant 0 : index
    %c0_2 = arith.constant 0 : index
    %1 = vector.load %arg2[%c0_1, %c0_2] : memref<8x128xf32, #tpu.memory_space<vmem>>, vector<8x128xf32>
    %cst = arith.constant 5.000000e-01 : f32
    %2 = vector.broadcast %cst : f32 to vector<8x128xf32>
    %3 = arith.mulf %2, %0 : vector<8x128xf32>
    %4 = math.tanh %3 : vector<8x128xf32>
    %cst_3 = arith.constant 5.000000e-01 : f32
    %5 = vector.broadcast %cst_3 : f32 to vector<8x128xf32>
    %6 = arith.mulf %5, %4 : vector<8x128xf32>
    %cst_4 = arith.constant 5.000000e-01 : f32
    %7 = vector.broadcast %cst_4 : f32 to vector<8x128xf32>
    %8 = arith.addf %6, %7 : vector<8x128xf32>
    %9 = arith.mulf %8, %1 : vector<8x128xf32>
    %10 = arith.addf %9, %9 : vector<8x128xf32>
    %11 = arith.addf %8, %1 : vector<8x128xf32>
    %12 = arith.subf %11, %10 : vector<8x128xf32>
    %cst_5 = arith.constant 1.000000e+00 : f32
    %13 = vector.broadcast %cst_5 : f32 to vector<8x128xf32>
    %14 = arith.subf %13, %12 : vector<8x128xf32>
    %15 = arith.mulf %12, %12 : vector<8x128xf32>
    %cst_6 = arith.constant 9.99999993E-9 : f32
    %16 = vector.broadcast %cst_6 : f32 to vector<8x128xf32>
    %17 = arith.addf %14, %16 : vector<8x128xf32>
    %18 = math.log %17 : vector<8x128xf32>
    %19 = arith.mulf %15, %18 : vector<8x128xf32>
    %cst_7 = arith.constant dense<0.000000e+00> : vector<128xf32>
    %20 = vector.multi_reduction <add>, %19, %cst_7 [0] : vector<8x128xf32> to vector<128xf32>
    %21 = vector.shape_cast %20 : vector<128xf32> to vector<1x128xf32>
    %22 = vector.shape_cast %21 : vector<1x128xf32> to vector<1x1x128xf32>
    %c0_8 = arith.constant 0 : index
    %c0_9 = arith.constant 0 : index
    %c0_10 = arith.constant 0 : index
    %23 = vector.load %arg3[%c0_8, %c0_9, %c0_10] : memref<1x1x128xf32, #tpu.memory_space<vmem>>, vector<1x1x128xf32>
    tpu.vector_store %arg3[%c0_8, %c0_9, %c0_10], %22 {strides = array<i32>} : memref<1x1x128xf32, #tpu.memory_space<vmem>>, vector<1x1x128xf32>,
    return
  }
  func.func @transform_0(%arg0: i32) -> (i32, i32) {
    %c0_i32 = arith.constant 0 : i32
    %c0_i32_0 = arith.constant 0 : i32
    return %arg0, %c0_i32 : i32, i32
  }
  func.func @transform_1(%arg0: i32) -> (i32, i32) {
    %c0_i32 = arith.constant 0 : i32
    %c0_i32_0 = arith.constant 0 : i32
    return %arg0, %c0_i32 : i32, i32
  }
  func.func @transform_2(%arg0: i32) -> (i32, i32, i32) {
    %c0_i32 = arith.constant 0 : i32
    %c0_i32_0 = arith.constant 0 : i32
    %c0_i32_1 = arith.constant 0 : i32
    return %arg0, %c0_i32, %c0_i32_0 : i32, i32, i32
  }
}

</mosaic_0001>

<llo_original>
// kernel: tpu_custom_call.1
$region0: #{tpu_custom_call.1}
  #allocation0 [shape = 'u32[]', space=smem, size = 0x4, offset = 0x4, fixed_abs, tag = 'smem constant byte address 0x4 - core index']
  #allocation1 [shape = 'u32[144,128]{1,0:T(1,128)}', space=vmem, size = 0x12000, scoped, tag = 'internal scratch']
  %s0 = inlined_call_operand.hbm [shape: f32[16,128], index: 0, kind: input, shape index: {}]
  %s1 = inlined_call_operand.hbm [shape: f32[16,128], index: 1, kind: input, shape index: {}]
  %s2 = inlined_call_operand.hbm [shape: f32[2,1,128], index: 2, kind: output, shape index: {}]
  %s3 = sld [smem:[#allocation0]]
  $region49: #{tpu_custom_call.1} parent=0
    _
  %s5 = ssub.s32 1, %s3
  %s6 = scalar_select 0, %s5, %s3
  $region1: #{tpu_custom_call.1} parent=0
    #allocation2 [shape = 'u8[8192]{0}', space=vmem, size = 0x2000, scoped, tag = 'input window, operand 0']
    #allocation3 [shape = 's32[2]{0}', space=sflag, size = 0x8, scoped, tag = 'scoped memory for tpu_custom_call.1']
    #allocation4 [shape = 's32[2]{0}', space=sflag, size = 0x8, scoped, tag = 'scoped memory for tpu_custom_call.1']
    #allocation5 [shape = 'u8[8192]{0}', space=vmem, size = 0x2000, scoped, tag = 'input window, operand 1']
    #allocation6 [shape = 's32[2]{0}', space=sflag, size = 0x8, scoped, tag = 'scoped memory for tpu_custom_call.1']
    #allocation7 [shape = 'u8[1024]{0}', space=vmem, size = 0x400, scoped, tag = 'output window, operand 0']
    %7 = vsyncpa [#allocation3], 0
    %s8 = scalar_lea.sflag [#allocation3], 1
    %9 = vsyncpa %s8, 0
    %10 = vsyncpa [#allocation6], 0
    %s11 = scalar_lea.sflag [#allocation6], 1
    %12 = vsyncpa %s11, 0
    %13 = vsyncpa [#allocation4], 0
    %s14 = scalar_lea.sflag [#allocation4], 1
    %15 = vsyncpa %s14, 0
    loop: start=0, step=1, limit=4
    $region2: #{tpu_custom_call.1} parent=1 // loop_pre_header
      _
    $region3: #{tpu_custom_call.1} parent=1 // loop_header
      %s17 = sphi 0, %s21
      %p18 = scmp.ge.s32.totalorder %s17, 4
      %s27 = sphi 0, %s29
      %s30 = sphi 0, %s27
      %s31 = sphi 0, %s30
      %s47 = sphi 0, %s31
      %s53 = sphi 0, %s55
      %s56 = sphi 0, %s53
      %s57 = sphi 0, %s56
      %s73 = sphi 0, %s57
      %s79 = sphi 0, %s81
      %s82 = sphi 0, %s79
      %s83 = sphi 0, %s82
      %s99 = sphi 0, %s83
    $region4: #{tpu_custom_call.1} parent=1 // loop_header_branch
      %20 = sbr.rel (%p18) target = $region8
    $region5: #{tpu_custom_call.1} parent=1 // loop_body
      %s22 = ssub.s32 %s17, 1
      %s23 = ssub.s32 %s17, 2
      %s24 = sadd.s32 %s17, 1
      %s25 = ssub.s32 %s17, %s24
      %p26 = scmp.eq.s32.totalorder %s25, 0
      %s28 = sadd.s32 %s27, 1
      %s29 = scalar_select %p26, %s27, %s28
      %p32 = pneg %p26
      %p33 = scmp.eq.s32.totalorder %s17, 1
      %p34 = por %p32, %p33
      %p35 = scmp.ne.s32.totalorder %s27, %s30
      %p36 = scmp.eq.s32.totalorder %s17, 0
      %p37 = por %p35, %p36
      %p38 = scmp.ne.s32.totalorder %s27, %s30
      %p39 = scmp.eq.s32.totalorder %s22, 1
      %p40 = por %p38, %p39
      %p41 = scmp.ne.s32.totalorder %s30, %s31
      %p42 = scmp.eq.s32.totalorder %s22, 0
      %p43 = por %p41, %p42
      %p44 = scmp.ne.s32.totalorder %s30, %s31
      %p45 = scmp.eq.s32.totalorder %s23, 1
      %p46 = por %p44, %p45
      %p48 = scmp.ne.s32.totalorder %s31, %s47
      %p49 = scmp.eq.s32.totalorder %s23, 0
      %p50 = por %p48, %p49
      %s51 = ssub.s32 %s17, %s24
      %p52 = scmp.eq.s32.totalorder %s51, 0
      %s54 = sadd.s32 %s53, 1
      %s55 = scalar_select %p52, %s53, %s54
      %p58 = pneg %p52
      %p59 = scmp.eq.s32.totalorder %s17, 1
      %p60 = por %p58, %p59
      %p61 = scmp.ne.s32.totalorder %s53, %s56
      %p62 = scmp.eq.s32.totalorder %s17, 0
      %p63 = por %p61, %p62
      %p64 = scmp.ne.s32.totalorder %s53, %s56
      %p65 = scmp.eq.s32.totalorder %s22, 1
      %p66 = por %p64, %p65
      %p67 = scmp.ne.s32.totalorder %s56, %s57
      %p68 = scmp.eq.s32.totalorder %s22, 0
      %p69 = por %p67, %p68
      %p70 = scmp.ne.s32.totalorder %s56, %s57
      %p71 = scmp.eq.s32.totalorder %s23, 1
      %p72 = por %p70, %p71
      %p74 = scmp.ne.s32.totalorder %s57, %s73
      %p75 = scmp.eq.s32.totalorder %s23, 0
      %p76 = por %p74, %p75
      %s77 = ssub.s32 %s17, %s24
      %p78 = scmp.eq.s32.totalorder %s77, 0
      %s80 = sadd.s32 %s79, 1
      %s81 = scalar_select %p78, %s79, %s80
      %p84 = pneg %p78
      %p85 = scmp.eq.s32.totalorder %s17, 1
      %p86 = por %p84, %p85
      %p87 = scmp.ne.s32.totalorder %s79, %s82
      %p88 = scmp.eq.s32.totalorder %s17, 0
      %p89 = por %p87, %p88
      %p90 = scmp.ne.s32.totalorder %s79, %s82
      %p91 = scmp.eq.s32.totalorder %s22, 1
      %p92 = por %p90, %p91
      %p93 = scmp.ne.s32.totalorder %s82, %s83
      %p94 = scmp.eq.s32.totalorder %s22, 0
      %p95 = por %p93, %p94
      %p96 = scmp.ne.s32.totalorder %s82, %s83
      %p97 = scmp.eq.s32.totalorder %s23, 1
      %p98 = por %p96, %p97
      %p100 = scmp.ne.s32.totalorder %s83, %s99
      %p101 = scmp.eq.s32.totalorder %s23, 0
      %p102 = por %p100, %p101
      %p103 = scmp.le.s32.totalorder 1, %s17
      %p104 = scmp.lt.s32.totalorder %s17, 3
      %p105 = pnand %p103, %p104
      %p106 = pneg %p105
      // Predicated region
      $region9: #{tpu_custom_call.1} parent=5 // pred_check
        _
      $region10: #{tpu_custom_call.1} parent=5 // pred_check_branch
        %108 = sbr.rel (%p105) target = $region12
      $region11: #{tpu_custom_call.1} parent=5 // pred_region
        %s109 = ssub.s32 %s17, 1
      $region12: #{tpu_custom_call.1} parent=5 // pred_fallthru
        _
      %p110 = scmp.lt.s32.totalorder %s17, 2
      // Predicated region
      $region13: #{tpu_custom_call.1} parent=5 // pred_check
        %p111 = pneg %p110
      $region14: #{tpu_custom_call.1} parent=5 // pred_check_branch
        %113 = sbr.rel (%p111) target = $region16
      $region15: #{tpu_custom_call.1} parent=5 // pred_region
        // Predicated region
        $region17: #{tpu_custom_call.1} parent=15 // pred_check
          %p114 = pneg %p37
        $region18: #{tpu_custom_call.1} parent=15 // pred_check_branch
          %116 = sbr.rel (%p114) target = $region20
        $region19: #{tpu_custom_call.1} parent=15 // pred_region
          %s117 = sand.u32 %s27, 1
          %s118 = scalar_lea.sflag [#allocation3], %s117
          %s119 = sand.u32 %s27, 1
          %s120 = smul.addr %s119, 8
          %s121 = scalar_lea.vmem [#allocation2], %s120
          %s123 = ssub.s32 128, 128
          %124 = vsyncadd %s118, %s123
          %s125 = smul.addr %s17, 128
          %s126 = scalar_lea.hbm %s0, %s125
          %s128 = sshll.u32 %s121, 4
          %s129 = int_to_ptr.vmem [resolvable:$true] %s128
          %131 = dma.hbm_to_vmem [thread:$0]  %s126, 128, %s129, %s118
        $region20: #{tpu_custom_call.1} parent=15 // pred_fallthru
          _
        // Predicated region
        $region21: #{tpu_custom_call.1} parent=15 // pred_check
          %p132 = pneg %p63
        $region22: #{tpu_custom_call.1} parent=15 // pred_check_branch
          %134 = sbr.rel (%p132) target = $region24
        $region23: #{tpu_custom_call.1} parent=15 // pred_region
          %s135 = sand.u32 %s53, 1
          %s136 = scalar_lea.sflag [#allocation6], %s135
          %s137 = sand.u32 %s53, 1
          %s138 = smul.addr %s137, 8
          %s139 = scalar_lea.vmem [#allocation5], %s138
          %s141 = ssub.s32 128, 128
          %142 = vsyncadd %s136, %s141
          %s143 = smul.addr %s17, 128
          %s144 = scalar_lea.hbm %s1, %s143
          %s146 = sshll.u32 %s139, 4
          %s147 = int_to_ptr.vmem [resolvable:$true] %s146
          %149 = dma.hbm_to_vmem [thread:$0]  %s144, 128, %s147, %s136
        $region24: #{tpu_custom_call.1} parent=15 // pred_fallthru
          _
      $region16: #{tpu_custom_call.1} parent=5 // pred_fallthru
        _
      %p150 = scmp.le.s32.totalorder 1, %s17
      %p151 = scmp.lt.s32.totalorder %s17, 3
      %p152 = pnand %p150, %p151
      %p153 = pneg %p152
      // Predicated region
      $region25: #{tpu_custom_call.1} parent=5 // pred_check
        _
      $region26: #{tpu_custom_call.1} parent=5 // pred_check_branch
        %155 = sbr.rel (%p152) target = $region28
      $region27: #{tpu_custom_call.1} parent=5 // pred_region
        %s156 = ssub.s32 %s17, 1
        %s157 = sand.u32 %s30, 1
        %s158 = scalar_lea.sflag [#allocation3], %s157
        %s159 = sand.u32 %s30, 1
        %s160 = smul.addr %s159, 8
        %s161 = scalar_lea.vmem [#allocation2], %s160
        // Predicated region
        $region29: #{tpu_custom_call.1} parent=27 // pred_check
          %p162 = pneg %p43
        $region30: #{tpu_custom_call.1} parent=27 // pred_check_branch
          %164 = sbr.rel (%p162) target = $region32
        $region31: #{tpu_custom_call.1} parent=27 // pred_region
          %165 = dma.done %s158, 128
        $region32: #{tpu_custom_call.1} parent=27 // pred_fallthru
          _
        %s166 = sand.u32 %s56, 1
        %s167 = scalar_lea.sflag [#allocation6], %s166
        %s168 = sand.u32 %s56, 1
        %s169 = smul.addr %s168, 8
        %s170 = scalar_lea.vmem [#allocation5], %s169
        // Predicated region
        $region33: #{tpu_custom_call.1} parent=27 // pred_check
          %p171 = pneg %p69
        $region34: #{tpu_custom_call.1} parent=27 // pred_check_branch
          %173 = sbr.rel (%p171) target = $region36
        $region35: #{tpu_custom_call.1} parent=27 // pred_region
          %174 = dma.done %s167, 128
        $region36: #{tpu_custom_call.1} parent=27 // pred_fallthru
          _
        %s175 = sand.u32 %s30, 1
        %s176 = scalar_lea.sflag [#allocation3], %s175
        %s177 = sand.u32 %s30, 1
        %s178 = smul.addr %s177, 8
        %s179 = scalar_lea.vmem [#allocation2], %s178
        %p180 = pneg %p43
        %p181 = pneg %p40
        %s182 = sand.u32 %s56, 1
        %s183 = scalar_lea.sflag [#allocation6], %s182
        %s184 = sand.u32 %s56, 1
        %s185 = smul.addr %s184, 8
        %s186 = scalar_lea.vmem [#allocation5], %s185
        %p187 = pneg %p69
        %p188 = pneg %p66
        %p189 = pneg %p95
        %p190 = pneg %p92
        %s191 = sand.u32 %s82, 1
        %s192 = scalar_lea.sflag [#allocation4], %s191
        %s193 = sand.u32 %s82, 1
        %s194 = scalar_lea.vmem [#allocation7], %s193
        %v195 = vld [vmem:[%s161] sm:$0xff]
        %v196 = vld [vmem:[%s170] sm:$0xff]
        %v197 = vmul.f32 %v195, 0.5
        %v198 = vtanh.pop %v197
        %v199 = vmul.f32 %v198, 0.5
        %v200 = vadd.f32 %v199, 0.5
        %v201 = vmul.f32 %v200, %v196
        %v202 = vadd.f32 %v201, %v201
        %v203 = vadd.f32 %v200, %v196
        %v204 = vsub.f32 %v203, %v202
        %v205 = vsub.f32 1.0, %v204
        %v206 = vmul.f32 %v204, %v204
        %v207 = vadd.f32 %v205, 1e-08
        %v208 = vlog2.pop %v207
        %v209 = vmul.f32 %v208, 0.6931472
        %v210 = vmul.f32 %v206, %v209
        %v211 = vrot.slane %v210, 4
        %v212 = vadd.f32 %v210, %v211
        %v213 = vrot.slane %v212, 2
        %v214 = vadd.f32 %v212, %v213
        %v215 = vrot.slane %v214, 1
        %v216 = vadd.f32 %v214, %v215
        %217 = vst [vmem:[%s194] sm:$0x1] %v216
        %s218 = sand.u32 %s82, 1
        %s219 = scalar_lea.sflag [#allocation4], %s218
        %s220 = sand.u32 %s82, 1
        %s221 = scalar_lea.vmem [#allocation7], %s220
        // Predicated region
        $region37: #{tpu_custom_call.1} parent=27 // pred_check
          %p222 = pneg %p92
        $region38: #{tpu_custom_call.1} parent=27 // pred_check_branch
          %224 = sbr.rel (%p222) target = $region40
        $region39: #{tpu_custom_call.1} parent=27 // pred_region
          %s226 = ssub.s32 16, 16
          %227 = vsyncadd %s219, %s226
          %s228 = smul.addr %s22, 16
          %s229 = scalar_lea.hbm %s2, %s228
          %s231 = sshll.u32 %s221, 4
          %s232 = int_to_ptr.vmem [resolvable:$true] %s231
          %234 = dma.vmem_to_hbm [thread:$0]  %s232, 16, %s229, %s219
        $region40: #{tpu_custom_call.1} parent=27 // pred_fallthru
          _
      $region28: #{tpu_custom_call.1} parent=5 // pred_fallthru
        _
      %p235 = scmp.le.s32.totalorder 2, %s17
      // Predicated region
      $region41: #{tpu_custom_call.1} parent=5 // pred_check
        %p236 = pneg %p235
      $region42: #{tpu_custom_call.1} parent=5 // pred_check_branch
        %238 = sbr.rel (%p236) target = $region44
      $region43: #{tpu_custom_call.1} parent=5 // pred_region
        %s239 = ssub.s32 %s17, 2
        // Predicated region
        $region45: #{tpu_custom_call.1} parent=43 // pred_check
          %p240 = pneg %p98
        $region46: #{tpu_custom_call.1} parent=43 // pred_check_branch
          %242 = sbr.rel (%p240) target = $region48
        $region47: #{tpu_custom_call.1} parent=43 // pred_region
          %s243 = sand.u32 %s83, 1
          %s244 = scalar_lea.sflag [#allocation4], %s243
          %s245 = sand.u32 %s83, 1
          %s246 = scalar_lea.vmem [#allocation7], %s245
          %247 = dma.done %s244, 16
        $region48: #{tpu_custom_call.1} parent=43 // pred_fallthru
          _
      $region44: #{tpu_custom_call.1} parent=5 // pred_fallthru
        _
    $region6: #{tpu_custom_call.1} parent=1 // loop_footer
      %s21 = sadd.s32 1, %s17
    $region7: #{tpu_custom_call.1} parent=1 // loop_footer_branch
      %16 = sbr.rel target = $region3
    $region8: #{tpu_custom_call.1} parent=1 // loop_exit
      _
    %248 = vsyncpa [#allocation3], 1
    %s249 = scalar_lea.sflag [#allocation3], 1
    %250 = vsyncpa %s249, 1
    %251 = vsyncpa [#allocation6], 1
    %s252 = scalar_lea.sflag [#allocation6], 1
    %253 = vsyncpa %s252, 1
    %254 = vsyncpa [#allocation4], 1
    %s255 = scalar_lea.sflag [#allocation4], 1
    %256 = vsyncpa %s255, 1

</llo_original>
